<compile_context>
chip_gen: v5e
topology: v5e:2x2
jax: 0.10.0
libtpu: 0.0.40
codegen_flags: <defaults>
</compile_context>

<pallas_src>
import functools

import jax
import jax.numpy as jnp
from jax.experimental import pallas as pl
from jax.experimental.pallas import tpu as pltpu

_LANE = 128


def _round_up(x, m):
    return (x + m - 1) // m * m


def _mlp_kernel(x_ref,
                w1_ref, b1_ref,
                w2_ref, b2_ref,
                w3_ref, b3_ref,
                w4_ref, b4_ref,
                o_ref):
    """relu(relu(relu(x@W1+b1)@W2+b2)@W3+b3)@W4+b4, f32 accumulation/epilogue."""
    # Cast x to the weight (compute) dtype in-kernel: avoids a wrapper-side
    # cast pass over x and keeps the x DMA a single read of the original data.
    x = x_ref[...].astype(w1_ref.dtype)

    h = jnp.dot(x, w1_ref[...], preferred_element_type=jnp.float32) + b1_ref[...]
    h = jnp.maximum(h, 0.0)

    h = jnp.dot(h.astype(w2_ref.dtype), w2_ref[...],
                preferred_element_type=jnp.float32) + b2_ref[...]
    h = jnp.maximum(h, 0.0)

    h = jnp.dot(h.astype(w3_ref.dtype), w3_ref[...],
                preferred_element_type=jnp.float32) + b3_ref[...]
    h = jnp.maximum(h, 0.0)

    h = jnp.dot(h.astype(w4_ref.dtype), w4_ref[...],
                preferred_element_type=jnp.float32) + b4_ref[...]

    o_ref[...] = h.astype(o_ref.dtype)


def prepare_params(params, *, use_bf16=True):
    """Pad/cast the weights ONCE into a device pytree (do NOT redo per call).

    params: dict with w{i}: (in, out) and b{i}: (1, out) — weights are the
    transpose of PyTorch's (out, in) Linear storage, so x @ W + b == Linear(x).
    Only w4/b4 need padding (output columns 61 -> 128, lane-dense stores).
    """
    w_dtype = jnp.bfloat16 if use_bf16 else jnp.float32
    d_out = params["w4"].shape[1]
    d_out_p = _round_up(d_out, _LANE)
    dev = {
        "w1": params["w1"].astype(w_dtype),
        "b1": params["b1"].astype(jnp.float32),
        "w2": params["w2"].astype(w_dtype),
        "b2": params["b2"].astype(jnp.float32),
        "w3": params["w3"].astype(w_dtype),
        "b3": params["b3"].astype(jnp.float32),
        "w4": jnp.pad(params["w4"],
                      ((0, 0), (0, d_out_p - d_out))).astype(w_dtype),
        "b4": jnp.pad(params["b4"],
                      ((0, 0), (0, d_out_p - d_out))).astype(jnp.float32),
    }
    return jax.device_put(dev)


@functools.partial(jax.jit, static_argnames=("d_out", "batch_tile"))
def net_forward(x, dev_params, *, d_out=61, batch_tile=None):
    """Run the fused MLP kernel. x: (B, 61) float32; dev_params: prepare_params()."""
    B, d_in = x.shape
    w1, b1 = dev_params["w1"], dev_params["b1"]
    w2, b2 = dev_params["w2"], dev_params["b2"]
    w3, b3 = dev_params["w3"], dev_params["b3"]
    w4, b4 = dev_params["w4"], dev_params["b4"]
    assert w1.shape[0] == d_in, (w1.shape, d_in)
    d_h1, d_h2, d_h3, d_out_p = w1.shape[1], w2.shape[1], w3.shape[1], w4.shape[1]

    # Batch tile: multiple of 128 (MXU/layout friendly), large to amortize
    # per-step overhead, but split >=2 ways when possible so the "parallel"
    # batch axis can feed both v7x TensorCores.
    if batch_tile is None:
        batch_tile = max(_LANE, min(1024, _round_up(-(-B // 2), _LANE)))
    assert batch_tile % _LANE == 0, "batch_tile must be a multiple of 128"
    grid = (pl.cdiv(B, batch_tile),)

    def resident(arr):
        # Same (whole-array) block every grid step -> stays resident in VMEM.
        return pl.BlockSpec(arr.shape, lambda i: (0, 0))

    # Honest VMEM budget: resident weights/biases (x2 buffering), double-
    # buffered x/out tiles, live f32 activations; 2x headroom. Far below the
    # physical VMEM on every generation (64 MiB v7x / 128 MiB v5e,v6e).
    bpe_w = jnp.dtype(w1.dtype).itemsize
    weight_bytes = (d_in * d_h1 + d_h1 * d_h2 + d_h2 * d_h3 + d_h3 * d_out_p) * bpe_w
    bias_bytes = (d_h1 + d_h2 + d_h3 + d_out_p) * 4
    io_bytes = 2 * batch_tile * d_in * x.dtype.itemsize + 2 * batch_tile * d_out_p * 4
    act_bytes = batch_tile * (d_h2 + d_h3) * 4
    vmem_limit = int(min(2 * (2 * (weight_bytes + bias_bytes) + io_bytes + act_bytes)
                         + (2 << 20), 48 << 20))

    out_p = pl.pallas_call(
        _mlp_kernel,
        out_shape=jax.ShapeDtypeStruct((B, d_out_p), jnp.float32),
        grid_spec=pltpu.PrefetchScalarGridSpec(
            num_scalar_prefetch=0,
            grid=grid,
            in_specs=[
                # x streamed unpadded: last dim (61) equals full array dim.
                pl.BlockSpec((batch_tile, d_in), lambda i: (i, 0)),
                resident(w1), resident(b1),
                resident(w2), resident(b2),
                resident(w3), resident(b3),
                resident(w4), resident(b4),
            ],
            # Output padded to 128 lanes -> unmasked, lane-dense stores.
            out_specs=pl.BlockSpec((batch_tile, d_out_p), lambda i: (i, 0)),
        ),
        compiler_params=pltpu.CompilerParams(
            dimension_semantics=("parallel",),
            vmem_limit_bytes=vmem_limit),
    )(x, w1, b1, w2, b2, w3, b3, w4, b4)

    return out_p[:, :d_out]


def init_params(key):
    """Deterministic init matching the nn.Linear shapes (weights stored (in, out))."""
    dims = [61, 128, 256, 128, 61]
    params = {}
    keys = jax.random.split(key, len(dims) - 1)
    for li, (d_in, d_out) in enumerate(zip(dims[:-1], dims[1:]), start=1):
        kw, kb = jax.random.split(keys[li - 1])
        bound = 1.0 / jnp.sqrt(d_in)  # same scale as PyTorch default init
        params[f"w{li}"] = jax.random.uniform(
            kw, (d_in, d_out), jnp.float32, -bound, bound)
        params[f"b{li}"] = jax.random.uniform(
            kb, (1, d_out), jnp.float32, -bound, bound)
    return params


def net_forward_ref(x, params):
    """Pure-JAX reference for correctness checking."""
    h = jnp.maximum(x @ params["w1"] + params["b1"], 0.0)
    h = jnp.maximum(h @ params["w2"] + params["b2"], 0.0)
    h = jnp.maximum(h @ params["w3"] + params["b3"], 0.0)
    return h @ params["w4"] + params["b4"]


if __name__ == "__main__":
    key = jax.random.PRNGKey(0)
    k_param, k_x1, k_x2 = jax.random.split(key, 3)
    params = init_params(k_param)

    # Prepare (pad + cast) weights once for each compute path.
    dev_bf16 = prepare_params(params, use_bf16=True)    # default / fast path
    dev_f32 = prepare_params(params, use_bf16=False)    # debug fallback

    # --- Small batch (8 rows, one ragged 128-row block) -------------------
    x_small = jax.random.normal(k_x1, (8, 61), jnp.float32)
    ref_small = net_forward_ref(x_small, params)

    out_f32 = jax.block_until_ready(net_forward(x_small, dev_f32))
    assert out_f32.shape == (8, 61), out_f32.shape
    assert jnp.allclose(out_f32, ref_small, atol=1e-4, rtol=1e-4), \
        "f32 kernel mismatch vs reference (small batch)"

    out_bf16 = jax.block_until_ready(net_forward(x_small, dev_bf16))
    assert out_bf16.shape == (8, 61), out_bf16.shape
    assert bool(jnp.all(jnp.isfinite(out_bf16))), "bf16 path produced non-finite values"
    assert jnp.allclose(out_bf16, ref_small, atol=5e-2, rtol=5e-2), \
        "bf16 kernel mismatch vs f32 reference (small batch)"

    # --- Ragged batch (200 rows -> tile 128, grid=2, masked last block) ---
    x_rag = jax.random.normal(k_x2, (200, 61), jnp.float32)
    ref_rag = net_forward_ref(x_rag, params)

    out_rag_f32 = jax.block_until_ready(net_forward(x_rag, dev_f32))
    assert out_rag_f32.shape == (200, 61), out_rag_f32.shape
    assert jnp.allclose(out_rag_f32, ref_rag, atol=1e-4, rtol=1e-4), \
        "f32 kernel mismatch vs reference (ragged batch)"

    out_rag_bf16 = jax.block_until_ready(net_forward(x_rag, dev_bf16))
    assert out_rag_bf16.shape == (200, 61), out_rag_bf16.shape
    assert jnp.allclose(out_rag_bf16, ref_rag, atol=5e-2, rtol=5e-2), \
        "bf16 kernel mismatch vs f32 reference (ragged batch)"

    print("KERNEL_OK")
</pallas_src>

<mosaic_0001>
module attributes {stable_mosaic.version = 11 : i64} {
  func.func @_mlp_kernel(%arg0: i32, %arg1: memref<128x61xf32, #tpu.memory_space<vmem>>, %arg2: memref<61x128xf32, #tpu.memory_space<vmem>>, %arg3: memref<1x128xf32, #tpu.memory_space<vmem>>, %arg4: memref<128x256xf32, #tpu.memory_space<vmem>>, %arg5: memref<1x256xf32, #tpu.memory_space<vmem>>, %arg6: memref<256x128xf32, #tpu.memory_space<vmem>>, %arg7: memref<1x128xf32, #tpu.memory_space<vmem>>, %arg8: memref<128x128xf32, #tpu.memory_space<vmem>>, %arg9: memref<1x128xf32, #tpu.memory_space<vmem>>, %arg10: memref<128x128xf32, #tpu.memory_space<vmem>>) attributes {dimension_semantics = [#tpu.dimension_semantics<parallel>], iteration_bounds = array<i64: 1>, scalar_prefetch = 0 : i64, scratch_operands = 0 : i64, tpu.core_type = #tpu.core_type<tc>, window_params = [{transform_indices = @transform_0, window_bounds = array<i64: 128, 61>}, {pipeline_mode = #tpu.pipeline_mode<synchronous>, transform_indices = @transform_1, window_bounds = array<i64: 61, 128>}, {pipeline_mode = #tpu.pipeline_mode<synchronous>, transform_indices = @transform_2, window_bounds = array<i64: 1, 128>}, {pipeline_mode = #tpu.pipeline_mode<synchronous>, transform_indices = @transform_3, window_bounds = array<i64: 128, 256>}, {pipeline_mode = #tpu.pipeline_mode<synchronous>, transform_indices = @transform_4, window_bounds = array<i64: 1, 256>}, {pipeline_mode = #tpu.pipeline_mode<synchronous>, transform_indices = @transform_5, window_bounds = array<i64: 256, 128>}, {pipeline_mode = #tpu.pipeline_mode<synchronous>, transform_indices = @transform_6, window_bounds = array<i64: 1, 128>}, {pipeline_mode = #tpu.pipeline_mode<synchronous>, transform_indices = @transform_7, window_bounds = array<i64: 128, 128>}, {pipeline_mode = #tpu.pipeline_mode<synchronous>, transform_indices = @transform_8, window_bounds = array<i64: 1, 128>}, {transform_indices = @transform_9, window_bounds = array<i64: 128, 128>}]} {
    %c0 = arith.constant 0 : index
    %c0_0 = arith.constant 0 : index
    %0 = vector.load %arg1[%c0, %c0_0] : memref<128x61xf32, #tpu.memory_space<vmem>>, vector<128x61xf32>
    %c0_1 = arith.constant 0 : index
    %c0_2 = arith.constant 0 : index
    %1 = vector.load %arg2[%c0_1, %c0_2] : memref<61x128xf32, #tpu.memory_space<vmem>>, vector<61x128xf32>
    %cst = arith.constant dense<0.000000e+00> : vector<128x128xf32>
    %2 = tpu.matmul %0, %1, %cst {dimension_numbers = #tpu.dot_dimension_numbers<[1], [0], [0], [1], [0, 0, 1, 1], [], []>} : vector<128x61xf32>, vector<61x128xf32>, vector<128x128xf32> -> vector<128x128xf32>
    %c0_3 = arith.constant 0 : index
    %c0_4 = arith.constant 0 : index
    %3 = vector.load %arg3[%c0_3, %c0_4] : memref<1x128xf32, #tpu.memory_space<vmem>>, vector<1x128xf32>
    %4 = vector.broadcast %3 : vector<1x128xf32> to vector<128x128xf32>
    %5 = arith.addf %2, %4 : vector<128x128xf32>
    %cst_5 = arith.constant 0.000000e+00 : f32
    %6 = vector.broadcast %cst_5 : f32 to vector<128x128xf32>
    %7 = arith.maximumf %5, %6 : vector<128x128xf32>
    %c0_6 = arith.constant 0 : index
    %c0_7 = arith.constant 0 : index
    %8 = vector.load %arg4[%c0_6, %c0_7] : memref<128x256xf32, #tpu.memory_space<vmem>>, vector<128x256xf32>
    %cst_8 = arith.constant dense<0.000000e+00> : vector<128x256xf32>
    %9 = tpu.matmul %7, %8, %cst_8 {dimension_numbers = #tpu.dot_dimension_numbers<[1], [0], [0], [1], [0, 0, 1, 1], [], []>} : vector<128x128xf32>, vector<128x256xf32>, vector<128x256xf32> -> vector<128x256xf32>
    %c0_9 = arith.constant 0 : index
    %c0_10 = arith.constant 0 : index
    %10 = vector.load %arg5[%c0_9, %c0_10] : memref<1x256xf32, #tpu.memory_space<vmem>>, vector<1x256xf32>
    %11 = vector.broadcast %10 : vector<1x256xf32> to vector<128x256xf32>
    %12 = arith.addf %9, %11 : vector<128x256xf32>
    %cst_11 = arith.constant 0.000000e+00 : f32
    %13 = vector.broadcast %cst_11 : f32 to vector<128x256xf32>
    %14 = arith.maximumf %12, %13 : vector<128x256xf32>
    %c0_12 = arith.constant 0 : index
    %c0_13 = arith.constant 0 : index
    %15 = vector.load %arg6[%c0_12, %c0_13] : memref<256x128xf32, #tpu.memory_space<vmem>>, vector<256x128xf32>
    %cst_14 = arith.constant dense<0.000000e+00> : vector<128x128xf32>
    %16 = tpu.matmul %14, %15, %cst_14 {dimension_numbers = #tpu.dot_dimension_numbers<[1], [0], [0], [1], [0, 0, 1, 1], [], []>} : vector<128x256xf32>, vector<256x128xf32>, vector<128x128xf32> -> vector<128x128xf32>
    %c0_15 = arith.constant 0 : index
    %c0_16 = arith.constant 0 : index
    %17 = vector.load %arg7[%c0_15, %c0_16] : memref<1x128xf32, #tpu.memory_space<vmem>>, vector<1x128xf32>
    %18 = vector.broadcast %17 : vector<1x128xf32> to vector<128x128xf32>
    %19 = arith.addf %16, %18 : vector<128x128xf32>
    %cst_17 = arith.constant 0.000000e+00 : f32
    %20 = vector.broadcast %cst_17 : f32 to vector<128x128xf32>
    %21 = arith.maximumf %19, %20 : vector<128x128xf32>
    %c0_18 = arith.constant 0 : index
    %c0_19 = arith.constant 0 : index
    %22 = vector.load %arg8[%c0_18, %c0_19] : memref<128x128xf32, #tpu.memory_space<vmem>>, vector<128x128xf32>
    %cst_20 = arith.constant dense<0.000000e+00> : vector<128x128xf32>
    %23 = tpu.matmul %21, %22, %cst_20 {dimension_numbers = #tpu.dot_dimension_numbers<[1], [0], [0], [1], [0, 0, 1, 1], [], []>} : vector<128x128xf32>, vector<128x128xf32>, vector<128x128xf32> -> vector<128x128xf32>
    %c0_21 = arith.constant 0 : index
    %c0_22 = arith.constant 0 : index
    %24 = vector.load %arg9[%c0_21, %c0_22] : memref<1x128xf32, #tpu.memory_space<vmem>>, vector<1x128xf32>
    %25 = vector.broadcast %24 : vector<1x128xf32> to vector<128x128xf32>
    %26 = arith.addf %23, %25 : vector<128x128xf32>
    %c0_23 = arith.constant 0 : index
    %c0_24 = arith.constant 0 : index
    %27 = vector.load %arg10[%c0_23, %c0_24] : memref<128x128xf32, #tpu.memory_space<vmem>>, vector<128x128xf32>
    tpu.vector_store %arg10[%c0_23, %c0_24], %26 {strides = array<i32>} : memref<128x128xf32, #tpu.memory_space<vmem>>, vector<128x128xf32>,
    return
  }
  func.func @transform_0(%arg0: i32) -> (i32, i32) {
    %c0_i32 = arith.constant 0 : i32
    %c0_i32_0 = arith.constant 0 : i32
    return %arg0, %c0_i32 : i32, i32
  }
  func.func @transform_1(%arg0: i32) -> (i32, i32) {
    %c0_i32 = arith.constant 0 : i32
    %c0_i32_0 = arith.constant 0 : i32
    %c0_i32_1 = arith.constant 0 : i32
    return %c0_i32, %c0_i32_0 : i32, i32
  }
  func.func @transform_2(%arg0: i32) -> (i32, i32) {
    %c0_i32 = arith.constant 0 : i32
    %c0_i32_0 = arith.constant 0 : i32
    %c0_i32_1 = arith.constant 0 : i32
    return %c0_i32, %c0_i32_0 : i32, i32
  }
  func.func @transform_3(%arg0: i32) -> (i32, i32) {
    %c0_i32 = arith.constant 0 : i32
    %c0_i32_0 = arith.constant 0 : i32
    %c0_i32_1 = arith.constant 0 : i32
    return %c0_i32, %c0_i32_0 : i32, i32
  }
  func.func @transform_4(%arg0: i32) -> (i32, i32) {
    %c0_i32 = arith.constant 0 : i32
    %c0_i32_0 = arith.constant 0 : i32
    %c0_i32_1 = arith.constant 0 : i32
    return %c0_i32, %c0_i32_0 : i32, i32
  }
  func.func @transform_5(%arg0: i32) -> (i32, i32) {
    %c0_i32 = arith.constant 0 : i32
    %c0_i32_0 = arith.constant 0 : i32
    %c0_i32_1 = arith.constant 0 : i32
    return %c0_i32, %c0_i32_0 : i32, i32
  }
  func.func @transform_6(%arg0: i32) -> (i32, i32) {
    %c0_i32 = arith.constant 0 : i32
    %c0_i32_0 = arith.constant 0 : i32
    %c0_i32_1 = arith.constant 0 : i32
    return %c0_i32, %c0_i32_0 : i32, i32
  }
  func.func @transform_7(%arg0: i32) -> (i32, i32) {
    %c0_i32 = arith.constant 0 : i32
    %c0_i32_0 = arith.constant 0 : i32
    %c0_i32_1 = arith.constant 0 : i32
    return %c0_i32, %c0_i32_0 : i32, i32
  }
  func.func @transform_8(%arg0: i32) -> (i32, i32) {
    %c0_i32 = arith.constant 0 : i32
    %c0_i32_0 = arith.constant 0 : i32
    %c0_i32_1 = arith.constant 0 : i32
    return %c0_i32, %c0_i32_0 : i32, i32
  }
  func.func @transform_9(%arg0: i32) -> (i32, i32) {
    %c0_i32 = arith.constant 0 : i32
    %c0_i32_0 = arith.constant 0 : i32
    return %arg0, %c0_i32 : i32, i32
  }
}

</mosaic_0001>

<llo_original>
// kernel: net_forward.1
$region0: #{net_forward.1}
  #allocation0 [shape = 'u32[]', space=smem, size = 0x4, offset = 0x4, fixed_abs, tag = 'smem constant byte address 0x4 - core index']
  #allocation1 [shape = 'u32[72,128]{1,0:T(1,128)}', space=vmem, size = 0x9000, scoped, tag = 'internal scratch']
  %s0 = inlined_call_operand.hbm [shape: f32[8,61], index: 0, kind: input, shape index: {}]
  %s1 = inlined_call_operand.hbm [shape: f32[61,128], index: 1, kind: input, shape index: {}]
  %s2 = inlined_call_operand.hbm [shape: f32[1,128], index: 2, kind: input, shape index: {}]
  %s3 = inlined_call_operand.hbm [shape: f32[128,256], index: 3, kind: input, shape index: {}]
  %s4 = inlined_call_operand.hbm [shape: f32[1,256], index: 4, kind: input, shape index: {}]
  %s5 = inlined_call_operand.hbm [shape: f32[256,128], index: 5, kind: input, shape index: {}]
  %s6 = inlined_call_operand.vmem [shape: f32[1,128], index: 6, kind: input, shape index: {}]
  %s7 = inlined_call_operand.hbm [shape: f32[128,128], index: 7, kind: input, shape index: {}]
  %s8 = inlined_call_operand.vmem [shape: f32[1,128], index: 8, kind: input, shape index: {}]
  %s9 = inlined_call_operand.hbm [shape: f32[8,128], index: 9, kind: output, shape index: {}]
  %s10 = sld [smem:[#allocation0]]
  $region74: #{net_forward.1} parent=0
    _
  %s12 = ssub.s32 1, %s10
  %s13 = scalar_select 0, %s12, %s10
  $region1: #{net_forward.1} parent=0
    #allocation2 [shape = 'u8[65536]{0}', space=vmem, size = 0x10000, scoped, tag = 'input window, operand 0, single buffered']
    #allocation3 [shape = 's32[1]{0}', space=sflag, size = 0x4, scoped, tag = 'scoped memory for net_forward.1']
    #allocation4 [shape = 's32[1]{0}', space=sflag, size = 0x4, scoped, tag = 'scoped memory for net_forward.1']
    #allocation5 [shape = 'u8[32768]{0}', space=vmem, size = 0x8000, scoped, tag = 'input window, operand 1, single buffered']
    #allocation6 [shape = 's32[1]{0}', space=sflag, size = 0x4, scoped, tag = 'scoped memory for net_forward.1']
    #allocation7 [shape = 'u8[512]{0}', space=vmem, size = 0x400, scoped, tag = 'input window, operand 2, single buffered']
    #allocation8 [shape = 'u8[131072]{0}', space=vmem, size = 0x20000, scoped, tag = 'input window, operand 3, single buffered']
    #allocation9 [shape = 's32[1]{0}', space=sflag, size = 0x4, scoped, tag = 'scoped memory for net_forward.1']
    #allocation10 [shape = 'u8[1024]{0}', space=vmem, size = 0x400, scoped, tag = 'input window, operand 4, single buffered']
    #allocation11 [shape = 'u8[131072]{0}', space=vmem, size = 0x20000, scoped, tag = 'input window, operand 5, single buffered']
    #allocation12 [shape = 's32[1]{0}', space=sflag, size = 0x4, scoped, tag = 'scoped memory for net_forward.1']
    #allocation13 [shape = 'u8[65536]{0}', space=vmem, size = 0x10000, scoped, tag = 'input window, operand 7, single buffered']
    #allocation14 [shape = 'u8[65536]{0}', space=vmem, size = 0x10000, scoped, tag = 'output window, operand 0, single buffered']
    %14 = vsyncpa [#allocation3], 0
    %15 = vsyncpa [#allocation6], 0
    %16 = vsyncpa [#allocation9], 0
    %17 = vsyncpa [#allocation12], 0
    %18 = vsyncpa [#allocation4], 0
    // Predicated region
    $region2: #{net_forward.1} parent=1 // pred_check
      _
    $region3: #{net_forward.1} parent=1 // pred_check_branch
      %20 = sbr.rel (0) target = $region5
    $region4: #{net_forward.1} parent=1 // pred_region
      %22 = vsyncadd [#allocation3], 1920
      %s23 = sshll.u32 %s0, 4
      %s24 = int_to_ptr.hbm [resolvable:$true] %s23
      %s25 = sshll.u32 [#allocation2], 4
      %s26 = int_to_ptr.vmem [resolvable:$true] %s25
      %31 = dma.hbm_to_vmem [thread:$0]  %s24, 128, %s26, [#allocation3], 128, 128, 8
    $region5: #{net_forward.1} parent=1 // pred_fallthru
      _
    // Predicated region
    $region6: #{net_forward.1} parent=1 // pred_check
      _
    $region7: #{net_forward.1} parent=1 // pred_check_branch
      %33 = sbr.rel (0) target = $region9
    $region8: #{net_forward.1} parent=1 // pred_region
      %35 = vsyncadd [#allocation6], 0
      %s36 = sshll.u32 %s1, 4
      %s37 = int_to_ptr.hbm [resolvable:$true] %s36
      %s38 = sshll.u32 [#allocation5], 4
      %s39 = int_to_ptr.vmem [resolvable:$true] %s38
      %44 = dma.hbm_to_vmem [thread:$0]  %s37, 1024, %s39, [#allocation6], 128, 128, 8
    $region9: #{net_forward.1} parent=1 // pred_fallthru
      _
    // Predicated region
    $region10: #{net_forward.1} parent=1 // pred_check
      _
    $region11: #{net_forward.1} parent=1 // pred_check_branch
      %46 = sbr.rel (0) target = $region13
    $region12: #{net_forward.1} parent=1 // pred_region
      %48 = vsyncadd [#allocation6], 0
      %s50 = sshll.u32 %s2, 4
      %s51 = int_to_ptr.hbm [resolvable:$true] %s50
      %s52 = sshll.u32 [#allocation7], 4
      %s53 = int_to_ptr.vmem [resolvable:$true] %s52
      %55 = dma.hbm_to_vmem [thread:$0]  %s51, 16, %s53, [#allocation6]
    $region13: #{net_forward.1} parent=1 // pred_fallthru
      _
    // Predicated region
    $region14: #{net_forward.1} parent=1 // pred_check
      _
    $region15: #{net_forward.1} parent=1 // pred_check_branch
      %57 = sbr.rel (0) target = $region17
    $region16: #{net_forward.1} parent=1 // pred_region
      %59 = vsyncadd [#allocation9], 0
      %s60 = sshll.u32 %s3, 4
      %s61 = int_to_ptr.hbm [resolvable:$true] %s60
      %s62 = sshll.u32 [#allocation8], 4
      %s63 = int_to_ptr.vmem [resolvable:$true] %s62
      %68 = dma.hbm_to_vmem [thread:$0]  %s61, 4096, %s63, [#allocation9], 256, 256, 16
    $region17: #{net_forward.1} parent=1 // pred_fallthru
      _
    // Predicated region
    $region18: #{net_forward.1} parent=1 // pred_check
      _
    $region19: #{net_forward.1} parent=1 // pred_check_branch
      %70 = sbr.rel (0) target = $region21
    $region20: #{net_forward.1} parent=1 // pred_region
      %72 = vsyncadd [#allocation9], 0
      %s74 = sshll.u32 %s4, 4
      %s75 = int_to_ptr.hbm [resolvable:$true] %s74
      %s76 = sshll.u32 [#allocation10], 4
      %s77 = int_to_ptr.vmem [resolvable:$true] %s76
      %79 = dma.hbm_to_vmem [thread:$0]  %s75, 32, %s77, [#allocation9]
    $region21: #{net_forward.1} parent=1 // pred_fallthru
      _
    // Predicated region
    $region22: #{net_forward.1} parent=1 // pred_check
      _
    $region23: #{net_forward.1} parent=1 // pred_check_branch
      %81 = sbr.rel (0) target = $region25
    $region24: #{net_forward.1} parent=1 // pred_region
      %83 = vsyncadd [#allocation12], 0
      %s84 = sshll.u32 %s5, 4
      %s85 = int_to_ptr.hbm [resolvable:$true] %s84
      %s86 = sshll.u32 [#allocation11], 4
      %s87 = int_to_ptr.vmem [resolvable:$true] %s86
      %92 = dma.hbm_to_vmem [thread:$0]  %s85, 4096, %s87, [#allocation12], 128, 128, 8
    $region25: #{net_forward.1} parent=1 // pred_fallthru
      _
    // Predicated region
    $region26: #{net_forward.1} parent=1 // pred_check
      _
    $region27: #{net_forward.1} parent=1 // pred_check_branch
      %94 = sbr.rel (0) target = $region29
    $region28: #{net_forward.1} parent=1 // pred_region
      _
    $region29: #{net_forward.1} parent=1 // pred_fallthru
      _
    // Predicated region
    $region30: #{net_forward.1} parent=1 // pred_check
      _
    $region31: #{net_forward.1} parent=1 // pred_check_branch
      %96 = sbr.rel (0) target = $region33
    $region32: #{net_forward.1} parent=1 // pred_region
      %98 = vsyncadd [#allocation12], 0
      %s99 = sshll.u32 %s7, 4
      %s100 = int_to_ptr.hbm [resolvable:$true] %s99
      %s101 = sshll.u32 [#allocation13], 4
      %s102 = int_to_ptr.vmem [resolvable:$true] %s101
      %107 = dma.hbm_to_vmem [thread:$0]  %s100, 2048, %s102, [#allocation12], 128, 128, 8
    $region33: #{net_forward.1} parent=1 // pred_fallthru
      _
    // Predicated region
    $region34: #{net_forward.1} parent=1 // pred_check
      _
    $region35: #{net_forward.1} parent=1 // pred_check_branch
      %109 = sbr.rel (0) target = $region37
    $region36: #{net_forward.1} parent=1 // pred_region
      _
    $region37: #{net_forward.1} parent=1 // pred_fallthru
      _
    // Predicated region
    $region38: #{net_forward.1} parent=1 // pred_check
      _
    $region39: #{net_forward.1} parent=1 // pred_check_branch
      %111 = sbr.rel (0) target = $region41
    $region40: #{net_forward.1} parent=1 // pred_region
      %113 = dma.done [#allocation3], 2048
    $region41: #{net_forward.1} parent=1 // pred_fallthru
      _
    // Predicated region
    $region42: #{net_forward.1} parent=1 // pred_check
      _
    $region43: #{net_forward.1} parent=1 // pred_check_branch
      %115 = sbr.rel (0) target = $region45
    $region44: #{net_forward.1} parent=1 // pred_region
      %117 = dma.done [#allocation6], 1024
    $region45: #{net_forward.1} parent=1 // pred_fallthru
      _
    // Predicated region
    $region46: #{net_forward.1} parent=1 // pred_check
      _
    $region47: #{net_forward.1} parent=1 // pred_check_branch
      %119 = sbr.rel (0) target = $region49
    $region48: #{net_forward.1} parent=1 // pred_region
      %121 = dma.done [#allocation6], 16
    $region49: #{net_forward.1} parent=1 // pred_fallthru
      _
    // Predicated region
    $region50: #{net_forward.1} parent=1 // pred_check
      _
    $region51: #{net_forward.1} parent=1 // pred_check_branch
      %123 = sbr.rel (0) target = $region53
    $region52: #{net_forward.1} parent=1 // pred_region
      %125 = dma.done [#allocation9], 4096
    $region53: #{net_forward.1} parent=1 // pred_fallthru
      _
    // Predicated region
    $region54: #{net_forward.1} parent=1 // pred_check
      _
    $region55: #{net_forward.1} parent=1 // pred_check_branch
      %127 = sbr.rel (0) target = $region57
    $region56: #{net_forward.1} parent=1 // pred_region
      %129 = dma.done [#allocation9], 32
    $region57: #{net_forward.1} parent=1 // pred_fallthru
      _
    // Predicated region
    $region58: #{net_forward.1} parent=1 // pred_check
      _
    $region59: #{net_forward.1} parent=1 // pred_check_branch
      %131 = sbr.rel (0) target = $region61
    $region60: #{net_forward.1} parent=1 // pred_region
      %133 = dma.done [#allocation12], 4096
    $region61: #{net_forward.1} parent=1 // pred_fallthru
      _
    // Predicated region
    $region62: #{net_forward.1} parent=1 // pred_check
      _
    $region63: #{net_forward.1} parent=1 // pred_check_branch
      %135 = sbr.rel (0) target = $region65
    $region64: #{net_forward.1} parent=1 // pred_region
      %137 = dma.done [#allocation12], 2048
    $region65: #{net_forward.1} parent=1 // pred_fallthru
      _
    %v138 = vld [vmem:[#allocation2] sm:$0xff]
    %v139 = vld [vmem:[#allocation2 + $0x8] sm:$0xff]
    %v140 = vld [vmem:[#allocation2 + $0x10] sm:$0xff]
    %v141 = vld [vmem:[#allocation2 + $0x18] sm:$0xff]
    %v142 = vld [vmem:[#allocation2 + $0x20] sm:$0xff]
    %v143 = vld [vmem:[#allocation2 + $0x28] sm:$0xff]
    %v144 = vld [vmem:[#allocation2 + $0x30] sm:$0xff]
    %v145 = vld [vmem:[#allocation2 + $0x38] sm:$0xff]
    %v146 = vld [vmem:[#allocation2 + $0x40] sm:$0xff]
    %v147 = vld [vmem:[#allocation2 + $0x48] sm:$0xff]
    %v148 = vld [vmem:[#allocation2 + $0x50] sm:$0xff]
    %v149 = vld [vmem:[#allocation2 + $0x58] sm:$0xff]
    %v150 = vld [vmem:[#allocation2 + $0x60] sm:$0xff]
    %v151 = vld [vmem:[#allocation2 + $0x68] sm:$0xff]
    %v152 = vld [vmem:[#allocation2 + $0x70] sm:$0xff]
    %v153 = vld [vmem:[#allocation2 + $0x78] sm:$0xff]
    %v154 = vld [vmem:[#allocation5] sm:$0xff]
    %v155 = vld [vmem:[#allocation5 + $0x8] sm:$0xff]
    %v156 = vld [vmem:[#allocation5 + $0x10] sm:$0xff]
    %v157 = vld [vmem:[#allocation5 + $0x18] sm:$0xff]
    %v158 = vld [vmem:[#allocation5 + $0x20] sm:$0xff]
    %v159 = vld [vmem:[#allocation5 + $0x28] sm:$0xff]
    %v160 = vld [vmem:[#allocation5 + $0x30] sm:$0xff]
    %v161 = vld [vmem:[#allocation5 + $0x38] sm:$0x1f]
    %v162 = vld [vmem:[#allocation7] sm:$0x1]
    %v164 = vperm.slane %v162, 0
    %vm166 = vcmask 498688
    %v168 = vsel %vm166, %v138, 0
    %v171 = vsel %vm166, %v139, 0
    %v174 = vsel %vm166, %v140, 0
    %v177 = vsel %vm166, %v141, 0
    %v180 = vsel %vm166, %v142, 0
    %v183 = vsel %vm166, %v143, 0
    %v186 = vsel %vm166, %v144, 0
    %v189 = vsel %vm166, %v145, 0
    %v192 = vsel %vm166, %v146, 0
    %v195 = vsel %vm166, %v147, 0
    %v198 = vsel %vm166, %v148, 0
    %v201 = vsel %vm166, %v149, 0
    %v204 = vsel %vm166, %v150, 0
    %v207 = vsel %vm166, %v151, 0
    %v210 = vsel %vm166, %v152, 0
    %v213 = vsel %vm166, %v153, 0
    %vm215 = vcmask 1044480
    %v217 = vsel %vm215, %v161, 0
    %219 = vmatpush.msra.mxu0 0.0
    %220 = vmatpush.msra.mxu0 0.0
    %221 = vmatpush.msra.mxu0 0.0
    %222 = vmatpush.msra.mxu0 0.0
    %223 = vmatpush.msra.mxu0 0.0
    %224 = vmatpush.msra.mxu0 0.0
    %225 = vmatpush.msra.mxu0 0.0
    %226 = vmatpush.msra.mxu0 0.0
    %227 = vmatpush.msra.mxu0 %v217
    %228 = vmatpush.msra.mxu0 %v160
    %229 = vmatpush.msra.mxu0 %v159
    %230 = vmatpush.msra.mxu0 %v158
    %231 = vmatpush.msra.mxu0 %v157
    %232 = vmatpush.msra.mxu0 %v156
    %233 = vmatpush.msra.mxu0 %v155
    %234 = vmatpush.msra.mxu0 %v154
    %235 = vmatmul.f32.gmra.mxu0 %v168
    %v236 = vpop.f32.mrf.mxu0
    %v237 = vadd.f32 %v164, %v236
    %238 = vmatmul.f32.gmra.mxu0 %v171
    %v239 = vpop.f32.mrf.mxu0
    %v240 = vadd.f32 %v164, %v239
    %241 = vmatmul.f32.gmra.mxu0 %v174
    %v242 = vpop.f32.mrf.mxu0
    %v243 = vadd.f32 %v164, %v242
    %244 = vmatmul.f32.gmra.mxu0 %v177
    %v245 = vpop.f32.mrf.mxu0
    %v246 = vadd.f32 %v164, %v245
    %247 = vmatmul.f32.gmra.mxu0 %v180
    %v248 = vpop.f32.mrf.mxu0
    %v249 = vadd.f32 %v164, %v248
    %250 = vmatmul.f32.gmra.mxu0 %v183
    %v251 = vpop.f32.mrf.mxu0
    %v252 = vadd.f32 %v164, %v251
    %253 = vmatmul.f32.gmra.mxu0 %v186
    %v254 = vpop.f32.mrf.mxu0
    %v255 = vadd.f32 %v164, %v254
    %256 = vmatmul.f32.gmra.mxu0 %v189
    %v257 = vpop.f32.mrf.mxu0
    %v258 = vadd.f32 %v164, %v257
    %259 = vmatmul.f32.gmra.mxu0 %v192
    %v260 = vpop.f32.mrf.mxu0
    %v261 = vadd.f32 %v164, %v260
    %262 = vmatmul.f32.gmra.mxu0 %v195
    %v263 = vpop.f32.mrf.mxu0
    %v264 = vadd.f32 %v164, %v263
    %265 = vmatmul.f32.gmra.mxu0 %v198
    %v266 = vpop.f32.mrf.mxu0
    %v267 = vadd.f32 %v164, %v266
    %268 = vmatmul.f32.gmra.mxu0 %v201
    %v269 = vpop.f32.mrf.mxu0
    %v270 = vadd.f32 %v164, %v269
    %271 = vmatmul.f32.gmra.mxu0 %v204
    %v272 = vpop.f32.mrf.mxu0
    %v273 = vadd.f32 %v164, %v272
    %274 = vmatmul.f32.gmra.mxu0 %v207
    %v275 = vpop.f32.mrf.mxu0
    %v276 = vadd.f32 %v164, %v275
    %277 = vmatmul.f32.gmra.mxu0 %v210
    %v278 = vpop.f32.mrf.mxu0
    %v279 = vadd.f32 %v164, %v278
    %280 = vmatmul.f32.gmra.mxu0 %v213
    %v281 = vpop.f32.mrf.mxu0
    %v282 = vadd.f32 %v164, %v281
    %283 = vdwg.mxu0
    %v284 = vmax.f32 %v237, 0.0
    %v285 = vmax.f32 %v240, 0.0
    %v286 = vmax.f32 %v243, 0.0
    %v287 = vmax.f32 %v246, 0.0
    %v288 = vmax.f32 %v249, 0.0
    %v289 = vmax.f32 %v252, 0.0
    %v290 = vmax.f32 %v255, 0.0
    %v291 = vmax.f32 %v258, 0.0
    %v292 = vmax.f32 %v261, 0.0
    %v293 = vmax.f32 %v264, 0.0
    %v294 = vmax.f32 %v267, 0.0
    %v295 = vmax.f32 %v270, 0.0
    %v296 = vmax.f32 %v273, 0.0
    %v297 = vmax.f32 %v276, 0.0
    %v298 = vmax.f32 %v279, 0.0
    %v299 = vmax.f32 %v282, 0.0
    %v300 = vld [vmem:[#allocation8] sm:$0xff]
    %v301 = vld [vmem:[#allocation8 + $0x8] sm:$0xff]
    %v302 = vld [vmem:[#allocation8 + $0x10] sm:$0xff]
    %v303 = vld [vmem:[#allocation8 + $0x18] sm:$0xff]
    %v304 = vld [vmem:[#allocation8 + $0x20] sm:$0xff]
    %v305 = vld [vmem:[#allocation8 + $0x28] sm:$0xff]
    %v306 = vld [vmem:[#allocation8 + $0x30] sm:$0xff]
    %v307 = vld [vmem:[#allocation8 + $0x38] sm:$0xff]
    %v308 = vld [vmem:[#allocation8 + $0x40] sm:$0xff]
    %v309 = vld [vmem:[#allocation8 + $0x48] sm:$0xff]
    %v310 = vld [vmem:[#allocation8 + $0x50] sm:$0xff]
    %v311 = vld [vmem:[#allocation8 + $0x58] sm:$0xff]
    %v312 = vld [vmem:[#allocation8 + $0x60] sm:$0xff]
    %v313 = vld [vmem:[#allocation8 + $0x68] sm:$0xff]
    %v314 = vld [vmem:[#allocation8 + $0x70] sm:$0xff]
    %v315 = vld [vmem:[#allocation8 + $0x78] sm:$0xff]
    %v316 = vld [vmem:[#allocation8 + $0x80] sm:$0xff]
    %v317 = vld [vmem:[#allocation8 + $0x88] sm:$0xff]
    %v318 = vld [vmem:[#allocation8 + $0x90] sm:$0xff]
    %v319 = vld [vmem:[#allocation8 + $0x98] sm:$0xff]
    %v320 = vld [vmem:[#allocation8 + $0xa0] sm:$0xff]
    %v321 = vld [vmem:[#allocation8 + $0xa8] sm:$0xff]
    %v322 = vld [vmem:[#allocation8 + $0xb0] sm:$0xff]
    %v323 = vld [vmem:[#allocation8 + $0xb8] sm:$0xff]
    %v324 = vld [vmem:[#allocation8 + $0xc0] sm:$0xff]
    %v325 = vld [vmem:[#allocation8 + $0xc8] sm:$0xff]
    %v326 = vld [vmem:[#allocation8 + $0xd0] sm:$0xff]
    %v327 = vld [vmem:[#allocation8 + $0xd8] sm:$0xff]
    %v328 = vld [vmem:[#allocation8 + $0xe0] sm:$0xff]
    %v329 = vld [vmem:[#allocation8 + $0xe8] sm:$0xff]
    %v330 = vld [vmem:[#allocation8 + $0xf0] sm:$0xff]
    %v331 = vld [vmem:[#allocation8 + $0xf8] sm:$0xff]
    %v332 = vld [vmem:[#allocation10] sm:$0x3]
    %v334 = vperm.slane %v332, 0
    %v335 = vperm.slane %v332, 1
    %338 = vmatpush.msra.mxu0 %v330
    %339 = vmatpush.msra.mxu0 %v328
    %340 = vmatpush.msra.mxu0 %v326
    %341 = vmatpush.msra.mxu0 %v324
    %342 = vmatpush.msra.mxu0 %v322
    %343 = vmatpush.msra.mxu0 %v320
    %344 = vmatpush.msra.mxu0 %v318
    %345 = vmatpush.msra.mxu0 %v316
    %346 = vmatpush.msra.mxu0 %v314
    %347 = vmatpush.msra.mxu0 %v312
    %348 = vmatpush.msra.mxu0 %v310
    %349 = vmatpush.msra.mxu0 %v308
    %350 = vmatpush.msra.mxu0 %v306
    %351 = vmatpush.msra.mxu0 %v304
    %352 = vmatpush.msra.mxu0 %v302
    %353 = vmatpush.msra.mxu0 %v300
    %354 = vmatmul.f32.gmra.mxu0 %v284
    %v355 = vpop.f32.mrf.mxu0
    %v356 = vadd.f32 %v334, %v355
    %357 = vmatmul.f32.gmra.mxu0 %v285
    %v358 = vpop.f32.mrf.mxu0
    %v359 = vadd.f32 %v334, %v358
    %360 = vmatmul.f32.gmra.mxu0 %v286
    %v361 = vpop.f32.mrf.mxu0
    %v362 = vadd.f32 %v334, %v361
    %363 = vmatmul.f32.gmra.mxu0 %v287
    %v364 = vpop.f32.mrf.mxu0
    %v365 = vadd.f32 %v334, %v364
    %366 = vmatmul.f32.gmra.mxu0 %v288
    %v367 = vpop.f32.mrf.mxu0
    %v368 = vadd.f32 %v334, %v367
    %369 = vmatmul.f32.gmra.mxu0 %v289
    %v370 = vpop.f32.mrf.mxu0
    %v371 = vadd.f32 %v334, %v370
    %372 = vmatmul.f32.gmra.mxu0 %v290
    %v373 = vpop.f32.mrf.mxu0
    %v374 = vadd.f32 %v334, %v373
    %375 = vmatmul.f32.gmra.mxu0 %v291
    %v376 = vpop.f32.mrf.mxu0
    %v377 = vadd.f32 %v334, %v376
    %378 = vmatmul.f32.gmra.mxu0 %v292
    %v379 = vpop.f32.mrf.mxu0
    %v380 = vadd.f32 %v334, %v379
    %381 = vmatmul.f32.gmra.mxu0 %v293
    %v382 = vpop.f32.mrf.mxu0
    %v383 = vadd.f32 %v334, %v382
    %384 = vmatmul.f32.gmra.mxu0 %v294
    %v385 = vpop.f32.mrf.mxu0
    %v386 = vadd.f32 %v334, %v385
    %387 = vmatmul.f32.gmra.mxu0 %v295
    %v388 = vpop.f32.mrf.mxu0
    %v389 = vadd.f32 %v334, %v388
    %390 = vmatmul.f32.gmra.mxu0 %v296
    %v391 = vpop.f32.mrf.mxu0
    %v392 = vadd.f32 %v334, %v391
    %393 = vmatmul.f32.gmra.mxu0 %v297
    %v394 = vpop.f32.mrf.mxu0
    %v395 = vadd.f32 %v334, %v394
    %396 = vmatmul.f32.gmra.mxu0 %v298
    %v397 = vpop.f32.mrf.mxu0
    %v398 = vadd.f32 %v334, %v397
    %399 = vmatmul.f32.gmra.mxu0 %v299
    %v400 = vpop.f32.mrf.mxu0
    %v401 = vadd.f32 %v334, %v400
    %402 = vdwg.mxu0
    %403 = vmatpush.msra.mxu0 %v331
    %404 = vmatpush.msra.mxu0 %v329
    %405 = vmatpush.msra.mxu0 %v327
    %406 = vmatpush.msra.mxu0 %v325
    %407 = vmatpush.msra.mxu0 %v323
    %408 = vmatpush.msra.mxu0 %v321
    %409 = vmatpush.msra.mxu0 %v319
    %410 = vmatpush.msra.mxu0 %v317
    %411 = vmatpush.msra.mxu0 %v315
    %412 = vmatpush.msra.mxu0 %v313
    %413 = vmatpush.msra.mxu0 %v311
    %414 = vmatpush.msra.mxu0 %v309
    %415 = vmatpush.msra.mxu0 %v307
    %416 = vmatpush.msra.mxu0 %v305
    %417 = vmatpush.msra.mxu0 %v303
    %418 = vmatpush.msra.mxu0 %v301
    %419 = vmatmul.f32.gmra.mxu0 %v284
    %v420 = vpop.f32.mrf.mxu0
    %v421 = vadd.f32 %v335, %v420
    %422 = vmatmul.f32.gmra.mxu0 %v285
    %v423 = vpop.f32.mrf.mxu0
    %v424 = vadd.f32 %v335, %v423
    %425 = vmatmul.f32.gmra.mxu0 %v286
    %v426 = vpop.f32.mrf.mxu0
    %v427 = vadd.f32 %v335, %v426
    %428 = vmatmul.f32.gmra.mxu0 %v287
    %v429 = vpop.f32.mrf.mxu0
    %v430 = vadd.f32 %v335, %v429
    %431 = vmatmul.f32.gmra.mxu0 %v288
    %v432 = vpop.f32.mrf.mxu0
    %v433 = vadd.f32 %v335, %v432
    %434 = vmatmul.f32.gmra.mxu0 %v289
    %v435 = vpop.f32.mrf.mxu0
    %v436 = vadd.f32 %v335, %v435
    %437 = vmatmul.f32.gmra.mxu0 %v290
    %v438 = vpop.f32.mrf.mxu0
    %v439 = vadd.f32 %v335, %v438
    %440 = vmatmul.f32.gmra.mxu0 %v291
    %v441 = vpop.f32.mrf.mxu0
    %v442 = vadd.f32 %v335, %v441
    %443 = vmatmul.f32.gmra.mxu0 %v292
    %v444 = vpop.f32.mrf.mxu0
    %v445 = vadd.f32 %v335, %v444
    %446 = vmatmul.f32.gmra.mxu0 %v293
    %v447 = vpop.f32.mrf.mxu0
    %v448 = vadd.f32 %v335, %v447
    %449 = vmatmul.f32.gmra.mxu0 %v294
    %v450 = vpop.f32.mrf.mxu0
    %v451 = vadd.f32 %v335, %v450
    %452 = vmatmul.f32.gmra.mxu0 %v295
    %v453 = vpop.f32.mrf.mxu0
    %v454 = vadd.f32 %v335, %v453
    %455 = vmatmul.f32.gmra.mxu0 %v296
    %v456 = vpop.f32.mrf.mxu0
    %v457 = vadd.f32 %v335, %v456
    %458 = vmatmul.f32.gmra.mxu0 %v297
    %v459 = vpop.f32.mrf.mxu0
    %v460 = vadd.f32 %v335, %v459
    %461 = vmatmul.f32.gmra.mxu0 %v298
    %v462 = vpop.f32.mrf.mxu0
    %v463 = vadd.f32 %v335, %v462
    %464 = vmatmul.f32.gmra.mxu0 %v299
    %v465 = vpop.f32.mrf.mxu0
    %v466 = vadd.f32 %v335, %v465
    %467 = vdwg.mxu0
    %v468 = vmax.f32 %v356, 0.0
    %v469 = vmax.f32 %v421, 0.0
    %v470 = vmax.f32 %v359, 0.0
    %v471 = vmax.f32 %v424, 0.0
    %v472 = vmax.f32 %v362, 0.0
    %v473 = vmax.f32 %v427, 0.0
    %v474 = vmax.f32 %v365, 0.0
    %v475 = vmax.f32 %v430, 0.0
    %v476 = vmax.f32 %v368, 0.0
    %v477 = vmax.f32 %v433, 0.0
    %v478 = vmax.f32 %v371, 0.0
    %v479 = vmax.f32 %v436, 0.0
    %v480 = vmax.f32 %v374, 0.0
    %v481 = vmax.f32 %v439, 0.0
    %v482 = vmax.f32 %v377, 0.0
    %v483 = vmax.f32 %v442, 0.0
    %v484 = vmax.f32 %v380, 0.0
    %v485 = vmax.f32 %v445, 0.0
    %v486 = vmax.f32 %v383, 0.0
    %v487 = vmax.f32 %v448, 0.0
    %v488 = vmax.f32 %v386, 0.0
    %v489 = vmax.f32 %v451, 0.0
    %v490 = vmax.f32 %v389, 0.0
    %v491 = vmax.f32 %v454, 0.0
    %v492 = vmax.f32 %v392, 0.0
    %v493 = vmax.f32 %v457, 0.0
    %v494 = vmax.f32 %v395, 0.0
    %v495 = vmax.f32 %v460, 0.0
    %v496 = vmax.f32 %v398, 0.0
    %v497 = vmax.f32 %v463, 0.0
    %v498 = vmax.f32 %v401, 0.0
    %v499 = vmax.f32 %v466, 0.0
    %v500 = vld [vmem:[#allocation11] sm:$0xff]
    %v501 = vld [vmem:[#allocation11 + $0x8] sm:$0xff]
    %v502 = vld [vmem:[#allocation11 + $0x10] sm:$0xff]
    %v503 = vld [vmem:[#allocation11 + $0x18] sm:$0xff]
    %v504 = vld [vmem:[#allocation11 + $0x20] sm:$0xff]
    %v505 = vld [vmem:[#allocation11 + $0x28] sm:$0xff]
    %v506 = vld [vmem:[#allocation11 + $0x30] sm:$0xff]
    %v507 = vld [vmem:[#allocation11 + $0x38] sm:$0xff]
    %v508 = vld [vmem:[#allocation11 + $0x40] sm:$0xff]
    %v509 = vld [vmem:[#allocation11 + $0x48] sm:$0xff]
    %v510 = vld [vmem:[#allocation11 + $0x50] sm:$0xff]
    %v511 = vld [vmem:[#allocation11 + $0x58] sm:$0xff]
    %v512 = vld [vmem:[#allocation11 + $0x60] sm:$0xff]
    %v513 = vld [vmem:[#allocation11 + $0x68] sm:$0xff]
    %v514 = vld [vmem:[#allocation11 + $0x70] sm:$0xff]
    %v515 = vld [vmem:[#allocation11 + $0x78] sm:$0xff]
    %v516 = vld [vmem:[#allocation11 + $0x80] sm:$0xff]
    %v517 = vld [vmem:[#allocation11 + $0x88] sm:$0xff]
    %v518 = vld [vmem:[#allocation11 + $0x90] sm:$0xff]
    %v519 = vld [vmem:[#allocation11 + $0x98] sm:$0xff]
    %v520 = vld [vmem:[#allocation11 + $0xa0] sm:$0xff]
    %v521 = vld [vmem:[#allocation11 + $0xa8] sm:$0xff]
    %v522 = vld [vmem:[#allocation11 + $0xb0] sm:$0xff]
    %v523 = vld [vmem:[#allocation11 + $0xb8] sm:$0xff]
    %v524 = vld [vmem:[#allocation11 + $0xc0] sm:$0xff]
    %v525 = vld [vmem:[#allocation11 + $0xc8] sm:$0xff]
    %v526 = vld [vmem:[#allocation11 + $0xd0] sm:$0xff]
    %v527 = vld [vmem:[#allocation11 + $0xd8] sm:$0xff]
    %v528 = vld [vmem:[#allocation11 + $0xe0] sm:$0xff]
    %v529 = vld [vmem:[#allocation11 + $0xe8] sm:$0xff]
    %v530 = vld [vmem:[#allocation11 + $0xf0] sm:$0xff]
    %v531 = vld [vmem:[#allocation11 + $0xf8] sm:$0xff]
    %v532 = vld [vmem:[%s6] sm:$0x1]
    %v534 = vperm.slane %v532, 0
    %536 = vmatpush.msra.mxu0 %v515
    %537 = vmatpush.msra.mxu0 %v514
    %538 = vmatpush.msra.mxu0 %v513
    %539 = vmatpush.msra.mxu0 %v512
    %540 = vmatpush.msra.mxu0 %v511
    %541 = vmatpush.msra.mxu0 %v510
    %542 = vmatpush.msra.mxu0 %v509
    %543 = vmatpush.msra.mxu0 %v508
    %544 = vmatpush.msra.mxu0 %v507
    %545 = vmatpush.msra.mxu0 %v506
    %546 = vmatpush.msra.mxu0 %v505
    %547 = vmatpush.msra.mxu0 %v504
    %548 = vmatpush.msra.mxu0 %v503
    %549 = vmatpush.msra.mxu0 %v502
    %550 = vmatpush.msra.mxu0 %v501
    %551 = vmatpush.msra.mxu0 %v500
    %552 = vmatmul.f32.gmra.mxu0 %v468
    %v553 = vpop.f32.mrf.mxu0
    %v554 = vadd.f32 %v534, %v553
    %555 = vmatmul.f32.gmra.mxu0 %v470
    %v556 = vpop.f32.mrf.mxu0
    %v557 = vadd.f32 %v534, %v556
    %558 = vmatmul.f32.gmra.mxu0 %v472
    %v559 = vpop.f32.mrf.mxu0
    %v560 = vadd.f32 %v534, %v559
    %561 = vmatmul.f32.gmra.mxu0 %v474
    %v562 = vpop.f32.mrf.mxu0
    %v563 = vadd.f32 %v534, %v562
    %564 = vmatmul.f32.gmra.mxu0 %v476
    %v565 = vpop.f32.mrf.mxu0
    %v566 = vadd.f32 %v534, %v565
    %567 = vmatmul.f32.gmra.mxu0 %v478
    %v568 = vpop.f32.mrf.mxu0
    %v569 = vadd.f32 %v534, %v568
    %570 = vmatmul.f32.gmra.mxu0 %v480
    %v571 = vpop.f32.mrf.mxu0
    %v572 = vadd.f32 %v534, %v571
    %573 = vmatmul.f32.gmra.mxu0 %v482
    %v574 = vpop.f32.mrf.mxu0
    %v575 = vadd.f32 %v534, %v574
    %576 = vmatmul.f32.gmra.mxu0 %v484
    %v577 = vpop.f32.mrf.mxu0
    %v578 = vadd.f32 %v534, %v577
    %579 = vmatmul.f32.gmra.mxu0 %v486
    %v580 = vpop.f32.mrf.mxu0
    %v581 = vadd.f32 %v534, %v580
    %582 = vmatmul.f32.gmra.mxu0 %v488
    %v583 = vpop.f32.mrf.mxu0
    %v584 = vadd.f32 %v534, %v583
    %585 = vmatmul.f32.gmra.mxu0 %v490
    %v586 = vpop.f32.mrf.mxu0
    %v587 = vadd.f32 %v534, %v586
    %588 = vmatmul.f32.gmra.mxu0 %v492
    %v589 = vpop.f32.mrf.mxu0
    %v590 = vadd.f32 %v534, %v589
    %591 = vmatmul.f32.gmra.mxu0 %v494
    %v592 = vpop.f32.mrf.mxu0
    %v593 = vadd.f32 %v534, %v592
    %594 = vmatmul.f32.gmra.mxu0 %v496
    %v595 = vpop.f32.mrf.mxu0
    %v596 = vadd.f32 %v534, %v595
    %597 = vmatmul.f32.gmra.mxu0 %v498
    %v598 = vpop.f32.mrf.mxu0
    %v599 = vadd.f32 %v534, %v598
    %600 = vdwg.mxu0
    %601 = vmatpush.msra.mxu0 %v531
    %602 = vmatpush.msra.mxu0 %v530
    %603 = vmatpush.msra.mxu0 %v529
    %604 = vmatpush.msra.mxu0 %v528
    %605 = vmatpush.msra.mxu0 %v527
    %606 = vmatpush.msra.mxu0 %v526
    %607 = vmatpush.msra.mxu0 %v525
    %608 = vmatpush.msra.mxu0 %v524
    %609 = vmatpush.msra.mxu0 %v523
    %610 = vmatpush.msra.mxu0 %v522
    %611 = vmatpush.msra.mxu0 %v521
    %612 = vmatpush.msra.mxu0 %v520
    %613 = vmatpush.msra.mxu0 %v519
    %614 = vmatpush.msra.mxu0 %v518
    %615 = vmatpush.msra.mxu0 %v517
    %616 = vmatpush.msra.mxu0 %v516
    %617 = vmatmul.f32.gmra.mxu0 %v469
    %v618 = vpop.f32.mrf.mxu0
    %v619 = vadd.f32 %v554, %v618
    %620 = vmatmul.f32.gmra.mxu0 %v471
    %v621 = vpop.f32.mrf.mxu0
    %v622 = vadd.f32 %v557, %v621
    %623 = vmatmul.f32.gmra.mxu0 %v473
    %v624 = vpop.f32.mrf.mxu0
    %v625 = vadd.f32 %v560, %v624
    %626 = vmatmul.f32.gmra.mxu0 %v475
    %v627 = vpop.f32.mrf.mxu0
    %v628 = vadd.f32 %v563, %v627
    %629 = vmatmul.f32.gmra.mxu0 %v477
    %v630 = vpop.f32.mrf.mxu0
    %v631 = vadd.f32 %v566, %v630
    %632 = vmatmul.f32.gmra.mxu0 %v479
    %v633 = vpop.f32.mrf.mxu0
    %v634 = vadd.f32 %v569, %v633
    %635 = vmatmul.f32.gmra.mxu0 %v481
    %v636 = vpop.f32.mrf.mxu0
    %v637 = vadd.f32 %v572, %v636
    %638 = vmatmul.f32.gmra.mxu0 %v483
    %v639 = vpop.f32.mrf.mxu0
    %v640 = vadd.f32 %v575, %v639
    %641 = vmatmul.f32.gmra.mxu0 %v485
    %v642 = vpop.f32.mrf.mxu0
    %v643 = vadd.f32 %v578, %v642
    %644 = vmatmul.f32.gmra.mxu0 %v487
    %v645 = vpop.f32.mrf.mxu0
    %v646 = vadd.f32 %v581, %v645
    %647 = vmatmul.f32.gmra.mxu0 %v489
    %v648 = vpop.f32.mrf.mxu0
    %v649 = vadd.f32 %v584, %v648
    %650 = vmatmul.f32.gmra.mxu0 %v491
    %v651 = vpop.f32.mrf.mxu0
    %v652 = vadd.f32 %v587, %v651
    %653 = vmatmul.f32.gmra.mxu0 %v493
    %v654 = vpop.f32.mrf.mxu0
    %v655 = vadd.f32 %v590, %v654
    %656 = vmatmul.f32.gmra.mxu0 %v495
    %v657 = vpop.f32.mrf.mxu0
    %v658 = vadd.f32 %v593, %v657
    %659 = vmatmul.f32.gmra.mxu0 %v497
    %v660 = vpop.f32.mrf.mxu0
    %v661 = vadd.f32 %v596, %v660
    %662 = vmatmul.f32.gmra.mxu0 %v499
    %v663 = vpop.f32.mrf.mxu0
    %v664 = vadd.f32 %v599, %v663
    %665 = vdwg.mxu0
    %v666 = vmax.f32 %v619, 0.0
    %v667 = vmax.f32 %v622, 0.0
    %v668 = vmax.f32 %v625, 0.0
    %v669 = vmax.f32 %v628, 0.0
    %v670 = vmax.f32 %v631, 0.0
    %v671 = vmax.f32 %v634, 0.0
    %v672 = vmax.f32 %v637, 0.0
    %v673 = vmax.f32 %v640, 0.0
    %v674 = vmax.f32 %v643, 0.0
    %v675 = vmax.f32 %v646, 0.0
    %v676 = vmax.f32 %v649, 0.0
    %v677 = vmax.f32 %v652, 0.0
    %v678 = vmax.f32 %v655, 0.0
    %v679 = vmax.f32 %v658, 0.0
    %v680 = vmax.f32 %v661, 0.0
    %v681 = vmax.f32 %v664, 0.0
    %v682 = vld [vmem:[#allocation13] sm:$0xff]
    %v683 = vld [vmem:[#allocation13 + $0x8] sm:$0xff]
    %v684 = vld [vmem:[#allocation13 + $0x10] sm:$0xff]
    %v685 = vld [vmem:[#allocation13 + $0x18] sm:$0xff]
    %v686 = vld [vmem:[#allocation13 + $0x20] sm:$0xff]
    %v687 = vld [vmem:[#allocation13 + $0x28] sm:$0xff]
    %v688 = vld [vmem:[#allocation13 + $0x30] sm:$0xff]
    %v689 = vld [vmem:[#allocation13 + $0x38] sm:$0xff]
    %v690 = vld [vmem:[#allocation13 + $0x40] sm:$0xff]
    %v691 = vld [vmem:[#allocation13 + $0x48] sm:$0xff]
    %v692 = vld [vmem:[#allocation13 + $0x50] sm:$0xff]
    %v693 = vld [vmem:[#allocation13 + $0x58] sm:$0xff]
    %v694 = vld [vmem:[#allocation13 + $0x60] sm:$0xff]
    %v695 = vld [vmem:[#allocation13 + $0x68] sm:$0xff]
    %v696 = vld [vmem:[#allocation13 + $0x70] sm:$0xff]
    %v697 = vld [vmem:[#allocation13 + $0x78] sm:$0xff]
    %v698 = vld [vmem:[%s8] sm:$0x1]
    %v700 = vperm.slane %v698, 0
    %702 = vmatpush.msra.mxu0 %v697
    %703 = vmatpush.msra.mxu0 %v696
    %704 = vmatpush.msra.mxu0 %v695
    %705 = vmatpush.msra.mxu0 %v694
    %706 = vmatpush.msra.mxu0 %v693
    %707 = vmatpush.msra.mxu0 %v692
    %708 = vmatpush.msra.mxu0 %v691
    %709 = vmatpush.msra.mxu0 %v690
    %710 = vmatpush.msra.mxu0 %v689
    %711 = vmatpush.msra.mxu0 %v688
    %712 = vmatpush.msra.mxu0 %v687
    %713 = vmatpush.msra.mxu0 %v686
    %714 = vmatpush.msra.mxu0 %v685
    %715 = vmatpush.msra.mxu0 %v684
    %716 = vmatpush.msra.mxu0 %v683
    %717 = vmatpush.msra.mxu0 %v682
    %718 = vmatmul.f32.gmra.mxu0 %v666
    %v719 = vpop.f32.mrf.mxu0
    %v720 = vadd.f32 %v700, %v719
    %721 = vmatmul.f32.gmra.mxu0 %v667
    %v722 = vpop.f32.mrf.mxu0
    %v723 = vadd.f32 %v700, %v722
    %724 = vmatmul.f32.gmra.mxu0 %v668
    %v725 = vpop.f32.mrf.mxu0
    %v726 = vadd.f32 %v700, %v725
    %727 = vmatmul.f32.gmra.mxu0 %v669
    %v728 = vpop.f32.mrf.mxu0
    %v729 = vadd.f32 %v700, %v728
    %730 = vmatmul.f32.gmra.mxu0 %v670
    %v731 = vpop.f32.mrf.mxu0
    %v732 = vadd.f32 %v700, %v731
    %733 = vmatmul.f32.gmra.mxu0 %v671
    %v734 = vpop.f32.mrf.mxu0
    %v735 = vadd.f32 %v700, %v734
    %736 = vmatmul.f32.gmra.mxu0 %v672
    %v737 = vpop.f32.mrf.mxu0
    %v738 = vadd.f32 %v700, %v737
    %739 = vmatmul.f32.gmra.mxu0 %v673
    %v740 = vpop.f32.mrf.mxu0
    %v741 = vadd.f32 %v700, %v740
    %742 = vmatmul.f32.gmra.mxu0 %v674
    %v743 = vpop.f32.mrf.mxu0
    %v744 = vadd.f32 %v700, %v743
    %745 = vmatmul.f32.gmra.mxu0 %v675
    %v746 = vpop.f32.mrf.mxu0
    %v747 = vadd.f32 %v700, %v746
    %748 = vmatmul.f32.gmra.mxu0 %v676
    %v749 = vpop.f32.mrf.mxu0
    %v750 = vadd.f32 %v700, %v749
    %751 = vmatmul.f32.gmra.mxu0 %v677
    %v752 = vpop.f32.mrf.mxu0
    %v753 = vadd.f32 %v700, %v752
    %754 = vmatmul.f32.gmra.mxu0 %v678
    %v755 = vpop.f32.mrf.mxu0
    %v756 = vadd.f32 %v700, %v755
    %757 = vmatmul.f32.gmra.mxu0 %v679
    %v758 = vpop.f32.mrf.mxu0
    %v759 = vadd.f32 %v700, %v758
    %760 = vmatmul.f32.gmra.mxu0 %v680
    %v761 = vpop.f32.mrf.mxu0
    %v762 = vadd.f32 %v700, %v761
    %763 = vmatmul.f32.gmra.mxu0 %v681
    %v764 = vpop.f32.mrf.mxu0
    %v765 = vadd.f32 %v700, %v764
    %766 = vdwg.mxu0
    %767 = vst [vmem:[#allocation14] sm:$0xff] %v720
    %768 = vst [vmem:[#allocation14 + $0x8] sm:$0xff] %v723
    %769 = vst [vmem:[#allocation14 + $0x10] sm:$0xff] %v726
    %770 = vst [vmem:[#allocation14 + $0x18] sm:$0xff] %v729
    %771 = vst [vmem:[#allocation14 + $0x20] sm:$0xff] %v732
    %772 = vst [vmem:[#allocation14 + $0x28] sm:$0xff] %v735
    %773 = vst [vmem:[#allocation14 + $0x30] sm:$0xff] %v738
    %774 = vst [vmem:[#allocation14 + $0x38] sm:$0xff] %v741
    %775 = vst [vmem:[#allocation14 + $0x40] sm:$0xff] %v744
    %776 = vst [vmem:[#allocation14 + $0x48] sm:$0xff] %v747
    %777 = vst [vmem:[#allocation14 + $0x50] sm:$0xff] %v750
    %778 = vst [vmem:[#allocation14 + $0x58] sm:$0xff] %v753
    %779 = vst [vmem:[#allocation14 + $0x60] sm:$0xff] %v756
    %780 = vst [vmem:[#allocation14 + $0x68] sm:$0xff] %v759
    %781 = vst [vmem:[#allocation14 + $0x70] sm:$0xff] %v762
    %782 = vst [vmem:[#allocation14 + $0x78] sm:$0xff] %v765
    // Predicated region
    $region66: #{net_forward.1} parent=1 // pred_check
      _
    $region67: #{net_forward.1} parent=1 // pred_check_branch
      %784 = sbr.rel (0) target = $region69
    $region68: #{net_forward.1} parent=1 // pred_region
      %786 = vsyncadd [#allocation4], 1920
      %s787 = sshll.u32 [#allocation14], 4
      %s788 = int_to_ptr.vmem [resolvable:$true] %s787
      %s789 = sshll.u32 %s9, 4
      %s790 = int_to_ptr.hbm [resolvable:$true] %s789
      %795 = dma.vmem_to_hbm [thread:$0]  %s788, 128, %s790, [#allocation4], 128, 128, 8
    $region69: #{net_forward.1} parent=1 // pred_fallthru
      _
    // Predicated region
    $region70: #{net_forward.1} parent=1 // pred_check
      _
    $region71: #{net_forward.1} parent=1 // pred_check_branch
      %797 = sbr.rel (0) target = $region73
    $region72: #{net_forward.1} parent=1 // pred_region
      %799 = dma.done [#allocation4], 2048
    $region73: #{net_forward.1} parent=1 // pred_fallthru
      _
    %800 = vsyncpa [#allocation3], 1
    %801 = vsyncpa [#allocation6], 1
    %802 = vsyncpa [#allocation9], 1
    %803 = vsyncpa [#allocation12], 1
    %804 = vsyncpa [#allocation4], 1

</llo_original>
